<compile_context>
chip_gen: v6e
topology: v6e:2x2x1
jax: 0.10.0
libtpu: 0.0.40
codegen_flags: <defaults>
</compile_context>

<pallas_src>
import jax
import jax.numpy as jnp
from jax.experimental import pallas as pl
from jax.experimental.pallas import tpu as pltpu

EPS = 1e-5

_VMEM_BUDGET = 12 << 20   # conservative live-VMEM target per grid step
_VMEM_LIMIT = 32 << 20    # explicit scoped-VMEM limit; <= physical on all gens


def _pick_bb(B, T, C):
    """Batches per grid step: as many as the VMEM budget allows, but keep
    >= 2 grid steps (v7x has 2 TensorCores) and divide B exactly so no
    partial (padded) batch blocks are ever produced."""
    slab = T * C * 4                              # one f32 (1, T, C) slab
    # ~6 live copies: double-buffered input, double-buffered y output, f32 temp(s)
    cap = max(1, _VMEM_BUDGET // (6 * slab))
    if B >= 2:
        cap = min(cap, max(1, B // 2))            # leave >= 2 grid steps
    bb = 1
    for d in range(1, min(cap, B) + 1):
        if B % d == 0:
            bb = d
    return bb


def _norm_kernel(x_ref, w_ref, b_ref, y_ref, mean_ref, std_ref):
    # x_ref: (BB, T, C); w_ref/b_ref: (1, C); y: (BB, T, C); mean/std: (BB, 1, C)
    x = x_ref[...].astype(jnp.float32)
    mean = jnp.mean(x, axis=1, keepdims=True)                     # (BB, 1, C)
    var = jnp.mean(jnp.square(x - mean), axis=1, keepdims=True)   # unbiased=False
    std = jnp.sqrt(var + EPS)
    inv_std = 1.0 / std                                           # exact; (BB,1,C) only
    w = w_ref[...][None, :, :]                                    # (1, 1, C)
    b = b_ref[...][None, :, :]
    scale = inv_std * w                                           # (BB, 1, C)
    shift = b - mean * scale
    # y = (x - mean) / std * w + b  ==  x * scale + shift  (mul+add per element)
    y_ref[...] = (x * scale + shift).astype(y_ref.dtype)
    mean_ref[...] = mean
    std_ref[...] = std


def _denorm_kernel(x_ref, w_ref, b_ref, mean_ref, std_ref, y_ref):
    # y = (x - b) / (w + eps^2) * std + mean  ==  x * scale + shift
    x = x_ref[...].astype(jnp.float32)
    w = w_ref[...][None, :, :]                                    # (1, 1, C)
    b = b_ref[...][None, :, :]
    inv_w = 1.0 / (w + EPS * EPS)                                 # per-channel, exact
    scale = std_ref[...] * inv_w                                  # (BB, 1, C)
    shift = mean_ref[...] - b * scale
    y_ref[...] = (x * scale + shift).astype(y_ref.dtype)


def revin_norm(x, weight, bias):
    """mode='norm': returns (x_normalized, mean, stdev)."""
    B, T, C = x.shape
    bb = _pick_bb(B, T, C)
    w2 = weight.reshape(1, C)
    b2 = bias.reshape(1, C)
    return pl.pallas_call(
        _norm_kernel,
        out_shape=(
            jax.ShapeDtypeStruct((B, T, C), x.dtype),
            jax.ShapeDtypeStruct((B, 1, C), jnp.float32),
            jax.ShapeDtypeStruct((B, 1, C), jnp.float32),
        ),
        grid_spec=pltpu.PrefetchScalarGridSpec(
            num_scalar_prefetch=0,
            grid=(B // bb,),
            in_specs=[
                pl.BlockSpec((bb, T, C), lambda i: (i, 0, 0)),
                pl.BlockSpec((1, C), lambda i: (0, 0)),
                pl.BlockSpec((1, C), lambda i: (0, 0)),
            ],
            out_specs=[
                pl.BlockSpec((bb, T, C), lambda i: (i, 0, 0)),
                pl.BlockSpec((bb, 1, C), lambda i: (i, 0, 0)),
                pl.BlockSpec((bb, 1, C), lambda i: (i, 0, 0)),
            ],
        ),
        compiler_params=pltpu.CompilerParams(
            dimension_semantics=("parallel",),
            vmem_limit_bytes=_VMEM_LIMIT,
        ),
    )(x, w2, b2)


def revin_denorm(x, mean, stdev, weight, bias):
    """mode='denorm': uses statistics produced by revin_norm.

    NOTE: the input `x` is aliased to the output (donated); do not reuse it
    after this call.
    """
    B, T, C = x.shape
    bb = _pick_bb(B, T, C)
    w2 = weight.reshape(1, C)
    b2 = bias.reshape(1, C)
    return pl.pallas_call(
        _denorm_kernel,
        out_shape=jax.ShapeDtypeStruct((B, T, C), x.dtype),
        grid_spec=pltpu.PrefetchScalarGridSpec(
            num_scalar_prefetch=0,
            grid=(B // bb,),
            in_specs=[
                pl.BlockSpec((bb, T, C), lambda i: (i, 0, 0)),
                pl.BlockSpec((1, C), lambda i: (0, 0)),
                pl.BlockSpec((1, C), lambda i: (0, 0)),
                pl.BlockSpec((bb, 1, C), lambda i: (i, 0, 0)),
                pl.BlockSpec((bb, 1, C), lambda i: (i, 0, 0)),
            ],
            out_specs=pl.BlockSpec((bb, T, C), lambda i: (i, 0, 0)),
        ),
        compiler_params=pltpu.CompilerParams(
            dimension_semantics=("parallel",),
            vmem_limit_bytes=_VMEM_LIMIT,
        ),
        input_output_aliases={0: 0},
    )(x, w2, b2, mean, stdev)


def _norm_ref(x, weight, bias):
    mean = jnp.mean(x, axis=1, keepdims=True)
    var = jnp.mean((x - mean) ** 2, axis=1, keepdims=True)
    std = jnp.sqrt(var + EPS)
    y = (x - mean) / std
    return y * weight + bias, mean, std


def _denorm_ref(x, mean, std, weight, bias):
    y = (x - bias) / (weight + EPS * EPS)
    return y * std + mean


if __name__ == "__main__":
    B, T, C = 2, 8, 32  # batch, seq_len, num_features
    key = jax.random.PRNGKey(0)
    x = jax.random.normal(key, (B, T, C), dtype=jnp.float32) * 3.0 + 1.5

    # Deterministic affine params (Normalize._init_params): ones / zeros.
    affine_weight = jnp.ones((C,), dtype=jnp.float32)
    affine_bias = jnp.zeros((C,), dtype=jnp.float32)

    # mode='norm'
    y, mean, stdev = revin_norm(x, affine_weight, affine_bias)
    jax.block_until_ready((y, mean, stdev))

    # Verify the norm pass BEFORE denorm (denorm donates y's buffer).
    y_ref, mean_ref, std_ref = _norm_ref(x, affine_weight, affine_bias)
    assert jnp.allclose(y, y_ref, atol=1e-5), "norm mismatch"
    assert jnp.allclose(mean, mean_ref, atol=1e-5), "mean mismatch"
    assert jnp.allclose(stdev, std_ref, atol=1e-5), "stdev mismatch"

    x_rec_ref = _denorm_ref(y_ref, mean_ref, std_ref, affine_weight, affine_bias)

    # mode='denorm' (round-trip back to the original signal); y is donated here.
    x_rec = revin_denorm(y, mean, stdev, affine_weight, affine_bias)
    jax.block_until_ready(x_rec)

    assert jnp.allclose(x_rec, x_rec_ref, atol=1e-4), "denorm mismatch"
    assert jnp.allclose(x_rec, x, atol=1e-3), "round-trip mismatch"

    print("KERNEL_OK")
</pallas_src>

<mosaic_0001>
module attributes {stable_mosaic.version = 11 : i64} {
  func.func @_norm_kernel(%arg0: i32, %arg1: memref<1x8x32xf32, #tpu.memory_space<vmem>>, %arg2: memref<1x32xf32, #tpu.memory_space<vmem>>, %arg3: memref<1x32xf32, #tpu.memory_space<vmem>>, %arg4: memref<1x8x32xf32, #tpu.memory_space<vmem>>, %arg5: memref<1x1x32xf32, #tpu.memory_space<vmem>>, %arg6: memref<1x1x32xf32, #tpu.memory_space<vmem>>) attributes {dimension_semantics = [#tpu.dimension_semantics<parallel>], iteration_bounds = array<i64: 2>, scalar_prefetch = 0 : i64, scratch_operands = 0 : i64, tpu.core_type = #tpu.core_type<tc>, window_params = [{transform_indices = @transform_0, window_bounds = array<i64: 1, 8, 32>}, {pipeline_mode = #tpu.pipeline_mode<synchronous>, transform_indices = @transform_1, window_bounds = array<i64: 1, 32>}, {pipeline_mode = #tpu.pipeline_mode<synchronous>, transform_indices = @transform_2, window_bounds = array<i64: 1, 32>}, {transform_indices = @transform_3, window_bounds = array<i64: 1, 8, 32>}, {transform_indices = @transform_4, window_bounds = array<i64: 1, 1, 32>}, {transform_indices = @transform_5, window_bounds = array<i64: 1, 1, 32>}]} {
    %c0 = arith.constant 0 : index
    %c0_0 = arith.constant 0 : index
    %c0_1 = arith.constant 0 : index
    %0 = vector.load %arg1[%c0, %c0_0, %c0_1] : memref<1x8x32xf32, #tpu.memory_space<vmem>>, vector<1x8x32xf32>
    %cst = arith.constant dense<0.000000e+00> : vector<1x32xf32>
    %1 = vector.multi_reduction <add>, %0, %cst [1] : vector<1x8x32xf32> to vector<1x32xf32>
    %2 = vector.shape_cast %1 : vector<1x32xf32> to vector<1x1x32xf32>
    %cst_2 = arith.constant 8.000000e+00 : f32
    %3 = vector.broadcast %cst_2 : f32 to vector<1x1x32xf32>
    %4 = arith.divf %2, %3 : vector<1x1x32xf32>
    %5 = vector.broadcast %4 : vector<1x1x32xf32> to vector<1x8x32xf32>
    %6 = arith.subf %0, %5 : vector<1x8x32xf32>
    %7 = arith.mulf %6, %6 : vector<1x8x32xf32>
    %cst_3 = arith.constant dense<0.000000e+00> : vector<1x32xf32>
    %8 = vector.multi_reduction <add>, %7, %cst_3 [1] : vector<1x8x32xf32> to vector<1x32xf32>
    %9 = vector.shape_cast %8 : vector<1x32xf32> to vector<1x1x32xf32>
    %cst_4 = arith.constant 8.000000e+00 : f32
    %10 = vector.broadcast %cst_4 : f32 to vector<1x1x32xf32>
    %11 = arith.divf %9, %10 : vector<1x1x32xf32>
    %cst_5 = arith.constant 9.99999974E-6 : f32
    %12 = vector.broadcast %cst_5 : f32 to vector<1x1x32xf32>
    %13 = arith.addf %11, %12 : vector<1x1x32xf32>
    %14 = math.sqrt %13 : vector<1x1x32xf32>
    %cst_6 = arith.constant 1.000000e+00 : f32
    %15 = vector.broadcast %cst_6 : f32 to vector<1x1x32xf32>
    %16 = arith.divf %15, %14 : vector<1x1x32xf32>
    %c0_7 = arith.constant 0 : index
    %c0_8 = arith.constant 0 : index
    %17 = vector.load %arg2[%c0_7, %c0_8] : memref<1x32xf32, #tpu.memory_space<vmem>>, vector<1x32xf32>
    %18 = vector.shape_cast %17 : vector<1x32xf32> to vector<1x1x32xf32>
    %c0_9 = arith.constant 0 : index
    %c0_10 = arith.constant 0 : index
    %19 = vector.load %arg3[%c0_9, %c0_10] : memref<1x32xf32, #tpu.memory_space<vmem>>, vector<1x32xf32>
    %20 = vector.shape_cast %19 : vector<1x32xf32> to vector<1x1x32xf32>
    %21 = arith.mulf %16, %18 : vector<1x1x32xf32>
    %22 = arith.mulf %4, %21 : vector<1x1x32xf32>
    %23 = arith.subf %20, %22 : vector<1x1x32xf32>
    %24 = vector.broadcast %21 : vector<1x1x32xf32> to vector<1x8x32xf32>
    %25 = arith.mulf %0, %24 : vector<1x8x32xf32>
    %26 = vector.broadcast %23 : vector<1x1x32xf32> to vector<1x8x32xf32>
    %27 = arith.addf %25, %26 : vector<1x8x32xf32>
    %c0_11 = arith.constant 0 : index
    %c0_12 = arith.constant 0 : index
    %c0_13 = arith.constant 0 : index
    %28 = vector.load %arg4[%c0_11, %c0_12, %c0_13] : memref<1x8x32xf32, #tpu.memory_space<vmem>>, vector<1x8x32xf32>
    tpu.vector_store %arg4[%c0_11, %c0_12, %c0_13], %27 {strides = array<i32>} : memref<1x8x32xf32, #tpu.memory_space<vmem>>, vector<1x8x32xf32>,
    %c0_14 = arith.constant 0 : index
    %c0_15 = arith.constant 0 : index
    %c0_16 = arith.constant 0 : index
    %29 = vector.load %arg5[%c0_14, %c0_15, %c0_16] : memref<1x1x32xf32, #tpu.memory_space<vmem>>, vector<1x1x32xf32>
    tpu.vector_store %arg5[%c0_14, %c0_15, %c0_16], %4 {strides = array<i32>} : memref<1x1x32xf32, #tpu.memory_space<vmem>>, vector<1x1x32xf32>,
    %c0_17 = arith.constant 0 : index
    %c0_18 = arith.constant 0 : index
    %c0_19 = arith.constant 0 : index
    %30 = vector.load %arg6[%c0_17, %c0_18, %c0_19] : memref<1x1x32xf32, #tpu.memory_space<vmem>>, vector<1x1x32xf32>
    tpu.vector_store %arg6[%c0_17, %c0_18, %c0_19], %14 {strides = array<i32>} : memref<1x1x32xf32, #tpu.memory_space<vmem>>, vector<1x1x32xf32>,
    return
  }
  func.func @transform_0(%arg0: i32) -> (i32, i32, i32) {
    %c0_i32 = arith.constant 0 : i32
    %c0_i32_0 = arith.constant 0 : i32
    %c0_i32_1 = arith.constant 0 : i32
    return %arg0, %c0_i32, %c0_i32_0 : i32, i32, i32
  }
  func.func @transform_1(%arg0: i32) -> (i32, i32) {
    %c0_i32 = arith.constant 0 : i32
    %c0_i32_0 = arith.constant 0 : i32
    %c0_i32_1 = arith.constant 0 : i32
    return %c0_i32, %c0_i32_0 : i32, i32
  }
  func.func @transform_2(%arg0: i32) -> (i32, i32) {
    %c0_i32 = arith.constant 0 : i32
    %c0_i32_0 = arith.constant 0 : i32
    %c0_i32_1 = arith.constant 0 : i32
    return %c0_i32, %c0_i32_0 : i32, i32
  }
  func.func @transform_3(%arg0: i32) -> (i32, i32, i32) {
    %c0_i32 = arith.constant 0 : i32
    %c0_i32_0 = arith.constant 0 : i32
    %c0_i32_1 = arith.constant 0 : i32
    return %arg0, %c0_i32, %c0_i32_0 : i32, i32, i32
  }
  func.func @transform_4(%arg0: i32) -> (i32, i32, i32) {
    %c0_i32 = arith.constant 0 : i32
    %c0_i32_0 = arith.constant 0 : i32
    %c0_i32_1 = arith.constant 0 : i32
    return %arg0, %c0_i32, %c0_i32_0 : i32, i32, i32
  }
  func.func @transform_5(%arg0: i32) -> (i32, i32, i32) {
    %c0_i32 = arith.constant 0 : i32
    %c0_i32_0 = arith.constant 0 : i32
    %c0_i32_1 = arith.constant 0 : i32
    return %arg0, %c0_i32, %c0_i32_0 : i32, i32, i32
  }
}

</mosaic_0001>

<llo_original>
// kernel: tpu_custom_call.1
$region0: #{tpu_custom_call.1}
  #allocation0 [shape = 'u32[]', space=smem, size = 0x4, offset = 0x4, fixed_abs, tag = 'smem constant byte address 0x4 - core index']
  #allocation1 [shape = 'u32[144,128]{1,0:T(1,128)}', space=vmem, size = 0x12000, scoped, tag = 'internal scratch']
  %s0 = inlined_call_operand.hbm [shape: f32[2,8,32], index: 0, kind: input, shape index: {}]
  %s1 = inlined_call_operand.vmem [shape: f32[1,32], index: 1, kind: input, shape index: {}]
  %s2 = inlined_call_operand.vmem [shape: f32[1,32], index: 2, kind: input, shape index: {}]
  %s3 = inlined_call_operand.hbm [shape: f32[2,8,32], index: 3, kind: output, shape index: {0}]
  %s4 = inlined_call_operand.hbm [shape: f32[2,1,32], index: 4, kind: output, shape index: {1}]
  %s5 = inlined_call_operand.hbm [shape: f32[2,1,32], index: 5, kind: output, shape index: {2}]
  %6 = xla_tuple %s3, %s4, %s5
  %s7 = sld [smem:[#allocation0]]
  $region65: #{tpu_custom_call.1} parent=0
    _
  %s9 = ssub.s32 1, %s7
  %s10 = scalar_select 0, %s9, %s7
  $region1: #{tpu_custom_call.1} parent=0
    #allocation2 [shape = 'u8[8192]{0}', space=vmem, size = 0x2000, scoped, tag = 'input window, operand 0']
    #allocation3 [shape = 's32[2]{0}', space=sflag, size = 0x8, scoped, tag = 'scoped memory for tpu_custom_call.1']
    #allocation4 [shape = 's32[2]{0}', space=sflag, size = 0x8, scoped, tag = 'scoped memory for tpu_custom_call.1']
    #allocation5 [shape = 'u8[8192]{0}', space=vmem, size = 0x2000, scoped, tag = 'output window, operand 0']
    #allocation6 [shape = 'u8[1024]{0}', space=vmem, size = 0x400, scoped, tag = 'output window, operand 1']
    #allocation7 [shape = 's32[2]{0}', space=sflag, size = 0x8, scoped, tag = 'scoped memory for tpu_custom_call.1']
    #allocation8 [shape = 'u8[1024]{0}', space=vmem, size = 0x400, scoped, tag = 'output window, operand 2']
    %11 = vsyncpa [#allocation3], 0
    %s12 = scalar_lea.sflag [#allocation3], 1
    %13 = vsyncpa %s12, 0
    %14 = vsyncpa [#allocation4], 0
    %s15 = scalar_lea.sflag [#allocation4], 1
    %16 = vsyncpa %s15, 0
    %17 = vsyncpa [#allocation7], 0
    %s18 = scalar_lea.sflag [#allocation7], 1
    %19 = vsyncpa %s18, 0
    loop: start=0, step=1, limit=4
    $region2: #{tpu_custom_call.1} parent=1 // loop_pre_header
      _
    $region3: #{tpu_custom_call.1} parent=1 // loop_header
      %s21 = sphi 0, %s25
      %p22 = scmp.ge.s32.totalorder %s21, 4
      %s31 = sphi 0, %s33
      %s34 = sphi 0, %s31
      %s35 = sphi 0, %s34
      %s51 = sphi 0, %s35
      %s55 = sphi 0, %s55
      %s57 = sphi 0, %s55
      %s58 = sphi 0, %s57
      %s72 = sphi 0, %s58
      %s76 = sphi 0, %s76
      %s78 = sphi 0, %s76
      %s79 = sphi 0, %s78
      %s93 = sphi 0, %s79
      %s99 = sphi 0, %s101
      %s102 = sphi 0, %s99
      %s103 = sphi 0, %s102
      %s119 = sphi 0, %s103
      %s125 = sphi 0, %s127
      %s128 = sphi 0, %s125
      %s129 = sphi 0, %s128
      %s145 = sphi 0, %s129
      %s151 = sphi 0, %s153
      %s154 = sphi 0, %s151
      %s155 = sphi 0, %s154
      %s171 = sphi 0, %s155
    $region4: #{tpu_custom_call.1} parent=1 // loop_header_branch
      %24 = sbr.rel (%p22) target = $region8
    $region5: #{tpu_custom_call.1} parent=1 // loop_body
      %s26 = ssub.s32 %s21, 1
      %s27 = ssub.s32 %s21, 2
      %s28 = sadd.s32 %s21, 1
      %s29 = ssub.s32 %s21, %s28
      %p30 = scmp.eq.s32.totalorder %s29, 0
      %s32 = sadd.s32 %s31, 1
      %s33 = scalar_select %p30, %s31, %s32
      %p36 = pneg %p30
      %p37 = scmp.eq.s32.totalorder %s21, 1
      %p38 = por %p36, %p37
      %p39 = scmp.ne.s32.totalorder %s31, %s34
      %p40 = scmp.eq.s32.totalorder %s21, 0
      %p41 = por %p39, %p40
      %p42 = scmp.ne.s32.totalorder %s31, %s34
      %p43 = scmp.eq.s32.totalorder %s26, 1
      %p44 = por %p42, %p43
      %p45 = scmp.ne.s32.totalorder %s34, %s35
      %p46 = scmp.eq.s32.totalorder %s26, 0
      %p47 = por %p45, %p46
      %p48 = scmp.ne.s32.totalorder %s34, %s35
      %p49 = scmp.eq.s32.totalorder %s27, 1
      %p50 = por %p48, %p49
      %p52 = scmp.ne.s32.totalorder %s35, %s51
      %p53 = scmp.eq.s32.totalorder %s27, 0
      %p54 = por %p52, %p53
      %s56 = sadd.s32 %s55, 1
      %p59 = scmp.eq.s32.totalorder %s21, 1
      %p60 = scmp.ne.s32.totalorder %s55, %s57
      %p61 = scmp.eq.s32.totalorder %s21, 0
      %p62 = por %p60, %p61
      %p63 = scmp.ne.s32.totalorder %s55, %s57
      %p64 = scmp.eq.s32.totalorder %s26, 1
      %p65 = por %p63, %p64
      %p66 = scmp.ne.s32.totalorder %s57, %s58
      %p67 = scmp.eq.s32.totalorder %s26, 0
      %p68 = por %p66, %p67
      %p69 = scmp.ne.s32.totalorder %s57, %s58
      %p70 = scmp.eq.s32.totalorder %s27, 1
      %p71 = por %p69, %p70
      %p73 = scmp.ne.s32.totalorder %s58, %s72
      %p74 = scmp.eq.s32.totalorder %s27, 0
      %p75 = por %p73, %p74
      %s77 = sadd.s32 %s76, 1
      %p80 = scmp.eq.s32.totalorder %s21, 1
      %p81 = scmp.ne.s32.totalorder %s76, %s78
      %p82 = scmp.eq.s32.totalorder %s21, 0
      %p83 = por %p81, %p82
      %p84 = scmp.ne.s32.totalorder %s76, %s78
      %p85 = scmp.eq.s32.totalorder %s26, 1
      %p86 = por %p84, %p85
      %p87 = scmp.ne.s32.totalorder %s78, %s79
      %p88 = scmp.eq.s32.totalorder %s26, 0
      %p89 = por %p87, %p88
      %p90 = scmp.ne.s32.totalorder %s78, %s79
      %p91 = scmp.eq.s32.totalorder %s27, 1
      %p92 = por %p90, %p91
      %p94 = scmp.ne.s32.totalorder %s79, %s93
      %p95 = scmp.eq.s32.totalorder %s27, 0
      %p96 = por %p94, %p95
      %s97 = ssub.s32 %s21, %s28
      %p98 = scmp.eq.s32.totalorder %s97, 0
      %s100 = sadd.s32 %s99, 1
      %s101 = scalar_select %p98, %s99, %s100
      %p104 = pneg %p98
      %p105 = scmp.eq.s32.totalorder %s21, 1
      %p106 = por %p104, %p105
      %p107 = scmp.ne.s32.totalorder %s99, %s102
      %p108 = scmp.eq.s32.totalorder %s21, 0
      %p109 = por %p107, %p108
      %p110 = scmp.ne.s32.totalorder %s99, %s102
      %p111 = scmp.eq.s32.totalorder %s26, 1
      %p112 = por %p110, %p111
      %p113 = scmp.ne.s32.totalorder %s102, %s103
      %p114 = scmp.eq.s32.totalorder %s26, 0
      %p115 = por %p113, %p114
      %p116 = scmp.ne.s32.totalorder %s102, %s103
      %p117 = scmp.eq.s32.totalorder %s27, 1
      %p118 = por %p116, %p117
      %p120 = scmp.ne.s32.totalorder %s103, %s119
      %p121 = scmp.eq.s32.totalorder %s27, 0
      %p122 = por %p120, %p121
      %s123 = ssub.s32 %s21, %s28
      %p124 = scmp.eq.s32.totalorder %s123, 0
      %s126 = sadd.s32 %s125, 1
      %s127 = scalar_select %p124, %s125, %s126
      %p130 = pneg %p124
      %p131 = scmp.eq.s32.totalorder %s21, 1
      %p132 = por %p130, %p131
      %p133 = scmp.ne.s32.totalorder %s125, %s128
      %p134 = scmp.eq.s32.totalorder %s21, 0
      %p135 = por %p133, %p134
      %p136 = scmp.ne.s32.totalorder %s125, %s128
      %p137 = scmp.eq.s32.totalorder %s26, 1
      %p138 = por %p136, %p137
      %p139 = scmp.ne.s32.totalorder %s128, %s129
      %p140 = scmp.eq.s32.totalorder %s26, 0
      %p141 = por %p139, %p140
      %p142 = scmp.ne.s32.totalorder %s128, %s129
      %p143 = scmp.eq.s32.totalorder %s27, 1
      %p144 = por %p142, %p143
      %p146 = scmp.ne.s32.totalorder %s129, %s145
      %p147 = scmp.eq.s32.totalorder %s27, 0
      %p148 = por %p146, %p147
      %s149 = ssub.s32 %s21, %s28
      %p150 = scmp.eq.s32.totalorder %s149, 0
      %s152 = sadd.s32 %s151, 1
      %s153 = scalar_select %p150, %s151, %s152
      %p156 = pneg %p150
      %p157 = scmp.eq.s32.totalorder %s21, 1
      %p158 = por %p156, %p157
      %p159 = scmp.ne.s32.totalorder %s151, %s154
      %p160 = scmp.eq.s32.totalorder %s21, 0
      %p161 = por %p159, %p160
      %p162 = scmp.ne.s32.totalorder %s151, %s154
      %p163 = scmp.eq.s32.totalorder %s26, 1
      %p164 = por %p162, %p163
      %p165 = scmp.ne.s32.totalorder %s154, %s155
      %p166 = scmp.eq.s32.totalorder %s26, 0
      %p167 = por %p165, %p166
      %p168 = scmp.ne.s32.totalorder %s154, %s155
      %p169 = scmp.eq.s32.totalorder %s27, 1
      %p170 = por %p168, %p169
      %p172 = scmp.ne.s32.totalorder %s155, %s171
      %p173 = scmp.eq.s32.totalorder %s27, 0
      %p174 = por %p172, %p173
      %p175 = scmp.le.s32.totalorder 1, %s21
      %p176 = scmp.lt.s32.totalorder %s21, 3
      %p177 = pnand %p175, %p176
      %p178 = pneg %p177
      // Predicated region
      $region9: #{tpu_custom_call.1} parent=5 // pred_check
        _
      $region10: #{tpu_custom_call.1} parent=5 // pred_check_branch
        %180 = sbr.rel (%p177) target = $region12
      $region11: #{tpu_custom_call.1} parent=5 // pred_region
        %s181 = ssub.s32 %s21, 1
        // Predicated region
        $region13: #{tpu_custom_call.1} parent=11 // pred_check
          %p182 = pneg %p68
        $region14: #{tpu_custom_call.1} parent=11 // pred_check_branch
          %184 = sbr.rel (%p182) target = $region16
        $region15: #{tpu_custom_call.1} parent=11 // pred_region
          _
        $region16: #{tpu_custom_call.1} parent=11 // pred_fallthru
          _
        // Predicated region
        $region17: #{tpu_custom_call.1} parent=11 // pred_check
          %p185 = pneg %p89
        $region18: #{tpu_custom_call.1} parent=11 // pred_check_branch
          %187 = sbr.rel (%p185) target = $region20
        $region19: #{tpu_custom_call.1} parent=11 // pred_region
          _
        $region20: #{tpu_custom_call.1} parent=11 // pred_fallthru
          _
      $region12: #{tpu_custom_call.1} parent=5 // pred_fallthru
        _
      %p188 = scmp.lt.s32.totalorder %s21, 2
      // Predicated region
      $region21: #{tpu_custom_call.1} parent=5 // pred_check
        %p189 = pneg %p188
      $region22: #{tpu_custom_call.1} parent=5 // pred_check_branch
        %191 = sbr.rel (%p189) target = $region24
      $region23: #{tpu_custom_call.1} parent=5 // pred_region
        // Predicated region
        $region25: #{tpu_custom_call.1} parent=23 // pred_check
          %p192 = pneg %p41
        $region26: #{tpu_custom_call.1} parent=23 // pred_check_branch
          %194 = sbr.rel (%p192) target = $region28
        $region27: #{tpu_custom_call.1} parent=23 // pred_region
          %s195 = sand.u32 %s31, 1
          %s196 = scalar_lea.sflag [#allocation3], %s195
          %s197 = sand.u32 %s31, 1
          %s198 = smul.addr %s197, 8
          %s199 = scalar_lea.vmem [#allocation2], %s198
          %s201 = ssub.s32 128, 128
          %202 = vsyncadd %s196, %s201
          %s203 = smul.addr %s21, 128
          %s204 = scalar_lea.hbm %s0, %s203
          %s206 = sshll.u32 %s199, 4
          %s207 = int_to_ptr.vmem [resolvable:$true] %s206
          %209 = dma.hbm_to_vmem [thread:$0]  %s204, 128, %s207, %s196
        $region28: #{tpu_custom_call.1} parent=23 // pred_fallthru
          _
      $region24: #{tpu_custom_call.1} parent=5 // pred_fallthru
        _
      %p210 = scmp.le.s32.totalorder 1, %s21
      %p211 = scmp.lt.s32.totalorder %s21, 3
      %p212 = pnand %p210, %p211
      %p213 = pneg %p212
      // Predicated region
      $region29: #{tpu_custom_call.1} parent=5 // pred_check
        _
      $region30: #{tpu_custom_call.1} parent=5 // pred_check_branch
        %215 = sbr.rel (%p212) target = $region32
      $region31: #{tpu_custom_call.1} parent=5 // pred_region
        %s216 = ssub.s32 %s21, 1
        %s217 = sand.u32 %s34, 1
        %s218 = scalar_lea.sflag [#allocation3], %s217
        %s219 = sand.u32 %s34, 1
        %s220 = smul.addr %s219, 8
        %s221 = scalar_lea.vmem [#allocation2], %s220
        // Predicated region
        $region33: #{tpu_custom_call.1} parent=31 // pred_check
          %p222 = pneg %p47
        $region34: #{tpu_custom_call.1} parent=31 // pred_check_branch
          %224 = sbr.rel (%p222) target = $region36
        $region35: #{tpu_custom_call.1} parent=31 // pred_region
          %225 = dma.done %s218, 128
        $region36: #{tpu_custom_call.1} parent=31 // pred_fallthru
          _
        %s226 = sand.u32 %s34, 1
        %s227 = scalar_lea.sflag [#allocation3], %s226
        %s228 = sand.u32 %s34, 1
        %s229 = smul.addr %s228, 8
        %s230 = scalar_lea.vmem [#allocation2], %s229
        %p231 = pneg %p47
        %p232 = pneg %p44
        %p233 = pneg %p68
        %p234 = pneg %p65
        %p235 = pneg %p89
        %p236 = pneg %p86
        %p237 = pneg %p115
        %p238 = pneg %p112
        %s239 = sand.u32 %s102, 1
        %s240 = scalar_lea.sflag [#allocation4], %s239
        %s241 = sand.u32 %s102, 1
        %s242 = smul.addr %s241, 8
        %s243 = scalar_lea.vmem [#allocation5], %s242
        %p244 = pneg %p141
        %p245 = pneg %p138
        %s246 = sand.u32 %s26, 1
        %s247 = scalar_lea.sflag [#allocation7], %s246
        %s248 = sand.u32 %s128, 1
        %s249 = scalar_lea.vmem [#allocation6], %s248
        %p250 = pneg %p167
        %p251 = pneg %p164
        %s252 = sand.u32 %s26, 1
        %s253 = scalar_lea.sflag [#allocation7], %s252
        %s254 = sand.u32 %s154, 1
        %s255 = scalar_lea.vmem [#allocation8], %s254
        %v256 = vld [vmem:[%s221] sm:$0xff]
        %vm257 = vcmask 261120
        %v258 = vsel %vm257, %v256, 0.0
        %v259 = vrot.slane %v258, 4
        %v260 = vadd.f32 %v258, %v259
        %v261 = vrot.slane %v260, 2
        %v262 = vadd.f32 %v260, %v261
        %v263 = vrot.slane %v262, 1
        %v264 = vadd.f32 %v262, %v263
        %v265 = vrcp.pop 8.0
        %v266 = vmul.f32 %v264, %v265
        %v267 = vsub.f32 %v256, %v266
        %v268 = vmul.f32 %v267, %v267
        %v269 = vsel %vm257, %v268, 0.0
        %v270 = vrot.slane %v269, 4
        %v271 = vadd.f32 %v269, %v270
        %v272 = vrot.slane %v271, 2
        %v273 = vadd.f32 %v271, %v272
        %v274 = vrot.slane %v273, 1
        %v275 = vadd.f32 %v273, %v274
        %v276 = vmul.f32 %v275, %v265
        %v277 = vadd.f32 %v276, 1e-05
        %v278 = vrsqrt.pop %v277
        %v279 = vmul.f32 %v277, %v278
        %vm280 = vcmp.eq.f32.partialorder %v277, inf
        %v281 = vsel %vm280, %v277, %v279
        %vm282 = vcmp.eq.f32.partialorder %v277, 0.0
        %v283 = vand.u32 %v277, 2147483648
        %v284 = vsel %vm282, %v283, %v281
        %v285 = vrcp.pop %v284
        %v286 = vmul.f32 1.0, %v285
        %v287 = vld [vmem:[%s1] sm:$0x1]
        %v288 = vld [vmem:[%s2] sm:$0x1]
        %v289 = vmul.f32 %v286, %v287
        %v290 = vmul.f32 %v266, %v289
        %v291 = vsub.f32 %v288, %v290
        %v292 = vlaneseq
        %v293 = vshrl.u32 %v292, 7
        %v294 = vsub.s32 0, %v293
        %v295 = vrot.slane %v289, %v294
        %v296 = vmul.f32 %v256, %v295
        %v298 = vlaneseq
        %v299 = vshrl.u32 %v298, 7
        %v300 = vsub.s32 0, %v299
        %v301 = vrot.slane %v291, %v300
        %v303 = vadd.f32 %v296, %v301
        %304 = vst.msk [vmem:[%s243] sm:$0xff] %vm257, %v303
        %vm305 = vcmask 253952
        %306 = vst.msk [vmem:[%s249] sm:$0x1] %vm305, %v266
        %307 = vst.msk [vmem:[%s255] sm:$0x1] %vm305, %v284
        %s308 = sand.u32 %s102, 1
        %s309 = scalar_lea.sflag [#allocation4], %s308
        %s310 = sand.u32 %s102, 1
        %s311 = smul.addr %s310, 8
        %s312 = scalar_lea.vmem [#allocation5], %s311
        %s313 = sand.u32 %s26, 1
        %s314 = scalar_lea.sflag [#allocation7], %s313
        %s315 = sand.u32 %s128, 1
        %s316 = scalar_lea.vmem [#allocation6], %s315
        %s317 = sand.u32 %s26, 1
        %s318 = scalar_lea.sflag [#allocation7], %s317
        %s319 = sand.u32 %s154, 1
        %s320 = scalar_lea.vmem [#allocation8], %s319
        // Predicated region
        $region37: #{tpu_custom_call.1} parent=31 // pred_check
          %p321 = pneg %p112
        $region38: #{tpu_custom_call.1} parent=31 // pred_check_branch
          %323 = sbr.rel (%p321) target = $region40
        $region39: #{tpu_custom_call.1} parent=31 // pred_region
          %s325 = ssub.s32 128, 128
          %326 = vsyncadd %s309, %s325
          %s327 = smul.addr %s26, 128
          %s328 = scalar_lea.hbm %s3, %s327
          %s330 = sshll.u32 %s312, 4
          %s331 = int_to_ptr.vmem [resolvable:$true] %s330
          %333 = dma.vmem_to_hbm [thread:$0]  %s331, 128, %s328, %s309
        $region40: #{tpu_custom_call.1} parent=31 // pred_fallthru
          _
        // Predicated region
        $region41: #{tpu_custom_call.1} parent=31 // pred_check
          %p334 = pneg %p138
        $region42: #{tpu_custom_call.1} parent=31 // pred_check_branch
          %336 = sbr.rel (%p334) target = $region44
        $region43: #{tpu_custom_call.1} parent=31 // pred_region
          %s338 = ssub.s32 16, 16
          %339 = vsyncadd %s314, %s338
          %s340 = smul.addr %s26, 16
          %s341 = scalar_lea.hbm %s4, %s340
          %s343 = sshll.u32 %s316, 4
          %s344 = int_to_ptr.vmem [resolvable:$true] %s343
          %346 = dma.vmem_to_hbm [thread:$0]  %s344, 16, %s341, %s314
        $region44: #{tpu_custom_call.1} parent=31 // pred_fallthru
          _
        // Predicated region
        $region45: #{tpu_custom_call.1} parent=31 // pred_check
          %p347 = pneg %p164
        $region46: #{tpu_custom_call.1} parent=31 // pred_check_branch
          %349 = sbr.rel (%p347) target = $region48
        $region47: #{tpu_custom_call.1} parent=31 // pred_region
          %s351 = ssub.s32 16, 16
          %352 = vsyncadd %s318, %s351
          %s353 = smul.addr %s26, 16
          %s354 = scalar_lea.hbm %s5, %s353
          %s356 = sshll.u32 %s320, 4
          %s357 = int_to_ptr.vmem [resolvable:$true] %s356
          %359 = dma.vmem_to_hbm [thread:$0]  %s357, 16, %s354, %s318
        $region48: #{tpu_custom_call.1} parent=31 // pred_fallthru
          _
      $region32: #{tpu_custom_call.1} parent=5 // pred_fallthru
        _
      %p360 = scmp.le.s32.totalorder 2, %s21
      // Predicated region
      $region49: #{tpu_custom_call.1} parent=5 // pred_check
        %p361 = pneg %p360
      $region50: #{tpu_custom_call.1} parent=5 // pred_check_branch
        %363 = sbr.rel (%p361) target = $region52
      $region51: #{tpu_custom_call.1} parent=5 // pred_region
        %s364 = ssub.s32 %s21, 2
        // Predicated region
        $region53: #{tpu_custom_call.1} parent=51 // pred_check
          %p365 = pneg %p118
        $region54: #{tpu_custom_call.1} parent=51 // pred_check_branch
          %367 = sbr.rel (%p365) target = $region56
        $region55: #{tpu_custom_call.1} parent=51 // pred_region
          %s368 = sand.u32 %s103, 1
          %s369 = scalar_lea.sflag [#allocation4], %s368
          %s370 = sand.u32 %s103, 1
          %s371 = smul.addr %s370, 8
          %s372 = scalar_lea.vmem [#allocation5], %s371
          %373 = dma.done %s369, 128
        $region56: #{tpu_custom_call.1} parent=51 // pred_fallthru
          _
        // Predicated region
        $region57: #{tpu_custom_call.1} parent=51 // pred_check
          %p374 = pneg %p144
        $region58: #{tpu_custom_call.1} parent=51 // pred_check_branch
          %376 = sbr.rel (%p374) target = $region60
        $region59: #{tpu_custom_call.1} parent=51 // pred_region
          %s377 = sand.u32 %s27, 1
          %s378 = scalar_lea.sflag [#allocation7], %s377
          %s379 = sand.u32 %s129, 1
          %s380 = scalar_lea.vmem [#allocation6], %s379
          %381 = dma.done %s378, 16
        $region60: #{tpu_custom_call.1} parent=51 // pred_fallthru
          _
        // Predicated region
        $region61: #{tpu_custom_call.1} parent=51 // pred_check
          %p382 = pneg %p170
        $region62: #{tpu_custom_call.1} parent=51 // pred_check_branch
          %384 = sbr.rel (%p382) target = $region64
        $region63: #{tpu_custom_call.1} parent=51 // pred_region
          %s385 = sand.u32 %s27, 1
          %s386 = scalar_lea.sflag [#allocation7], %s385
          %s387 = sand.u32 %s155, 1
          %s388 = scalar_lea.vmem [#allocation8], %s387
          %389 = dma.done %s386, 16
        $region64: #{tpu_custom_call.1} parent=51 // pred_fallthru
          _
      $region52: #{tpu_custom_call.1} parent=5 // pred_fallthru
        _
    $region6: #{tpu_custom_call.1} parent=1 // loop_footer
      %s25 = sadd.s32 1, %s21
    $region7: #{tpu_custom_call.1} parent=1 // loop_footer_branch
      %20 = sbr.rel target = $region3
    $region8: #{tpu_custom_call.1} parent=1 // loop_exit
      _
    %390 = vsyncpa [#allocation3], 1
    %s391 = scalar_lea.sflag [#allocation3], 1
    %392 = vsyncpa %s391, 1
    %393 = vsyncpa [#allocation4], 1
    %s394 = scalar_lea.sflag [#allocation4], 1
    %395 = vsyncpa %s394, 1
    %396 = vsyncpa [#allocation7], 1
    %s397 = scalar_lea.sflag [#allocation7], 1
    %398 = vsyncpa %s397, 1

</llo_original>
